<compile_context>
chip_gen: v7x
topology: tpu7x:2x2x1
jax: 0.10.0
libtpu: 0.0.40
codegen_flags: <defaults>
</compile_context>

<pallas_src>
import numpy as np
import jax
import jax.numpy as jnp
from jax import lax
from jax.experimental import pallas as pl
from jax.experimental.pallas import tpu as pltpu

LANE = 128
SUBLANE = 8


def _round_up(x, m):
    return ((x + m - 1) // m) * m


def _vmem_limit_bytes():
    """Generation-aware scoped-VMEM limit (~75% of physical capacity)."""
    try:
        cap = pltpu.get_tpu_info().vmem_capacity_bytes
    except Exception:
        cap = 64 * 1024 * 1024          # safe fallback (v7x-sized)
    return int(cap * 3 // 4)


def _pick_group(num_graphs, n_s_pad, n_t_pad, c_out_pad, vmem_budget_bytes):
    """Graphs per grid step: bounded by VMEM working set and >=2 grid steps."""
    per_graph = 4 * (4 * n_s_pad * n_t_pad          # softmax temporaries
                     + 2 * c_out_pad * n_t_pad      # h_tT + hoisted bias
                     + n_s_pad * c_out_pad          # h_s rows
                     + 4 * n_t_pad * SUBLANE)       # buffered xtT / out blocks
    g = max(1, min(8, num_graphs,
                   int((vmem_budget_bytes // 2) // max(per_graph, 1))))
    # keep >= 2 grid steps so both v7x TensorCores get work and the output
    # writeback DMA has an iteration to hide behind.
    while g > 1 and (num_graphs + g - 1) // g < 2:
        g -= 1
    return g


def _matching_kernel(s_len_ref, t_len_ref, xs_ref, xtT_ref, w_ref, b_ref,
                     wt_ref, bcol_ref, out_ref):
    # s_len_ref / t_len_ref : SMEM int32 [B_pad] (scalar-prefetched lengths)
    # xs_ref  : (G, N_s, C_in)          xtT_ref : (G, C_in, N_t)  (pre-transposed)
    # w_ref   : (C_in, C_out)           b_ref   : (1, C_out)
    # wt_ref  : (C_out, C_in)           bcol_ref: (C_out, 1)
    # out_ref : (G, N_s, N_t)
    G, N_s, C_in = xs_ref.shape
    N_t = xtT_ref.shape[2]
    C_out = w_ref.shape[1]

    # ---- psi (source): one fused MXU matmul over all G graphs ----
    xs = xs_ref[...].reshape(G * N_s, C_in)
    h_s = jnp.maximum(
        jnp.dot(xs, w_ref[...], preferred_element_type=jnp.float32)
        + b_ref[...],
        0.0)                                                  # (G*N_s, C_out)

    # ---- hoisted loop invariants (JAX does not CSE broadcasts) ----
    bias_t = jnp.broadcast_to(bcol_ref[...], (C_out, N_t))    # (C_out, N_t)
    rows = lax.broadcasted_iota(jnp.int32, (N_s, 1), 0)
    cols = lax.broadcasted_iota(jnp.int32, (1, N_t), 1)
    base = pl.program_id(0) * G
    NEG = jnp.float32(-1e30)        # finite sentinel: no -inf / isfinite pass

    for g in range(G):              # G is a small static constant (unrolled)
        # ---- psi (target), produced already transposed: (C_out, N_t).
        #      Avoids any materialized transpose feeding the sim matmul. ----
        h_tT = jnp.maximum(
            jnp.dot(wt_ref[...], xtT_ref[g],
                    preferred_element_type=jnp.float32) + bias_t,
            0.0)

        # ---- sim == 'dot': plain (N_s, C_out) @ (C_out, N_t) MXU matmul ----
        s_hat = jnp.dot(h_s[g * N_s:(g + 1) * N_s, :], h_tT,
                        preferred_element_type=jnp.float32)   # (N_s, N_t)

        # ---- masked softmax over targets: separable masks, single select ----
        sl = s_len_ref[base + g]
        tl = t_len_ref[base + g]
        col_valid = cols < tl                                  # (1, N_t)
        row_valid = (rows < sl).astype(jnp.float32)            # (N_s, 1)

        s_m = jnp.where(col_valid, s_hat, NEG)
        m = jnp.max(s_m, axis=-1, keepdims=True)
        e = jnp.exp(s_m - m)                 # masked cols underflow to exact 0
        denom = jnp.sum(e, axis=-1, keepdims=True)             # >= 1 always
        inv = pl.reciprocal(denom, approx=False)
        # row_valid zeroes padded source rows and padded graphs exactly.
        out_ref[g, :, :] = (e * inv * row_valid).astype(out_ref.dtype)


def euclidean_graph_matching_dense(xs_dense, xtT_dense, w, b, wt, bcol,
                                   s_len, t_len, *, group, vmem_limit_bytes):
    """Fused psi + dot-similarity + masked-softmax Pallas kernel.

    xs_dense : (B_pad, N_s_pad, C_in) f32    (N_s_pad multiple of 8)
    xtT_dense: (B_pad, C_in, N_t_pad) f32    (N_t_pad multiple of 128, lane-dense)
    w: (C_in, C_out_pad) f32, b: (1, C_out_pad) f32
    wt: (C_out_pad, C_in) f32, bcol: (C_out_pad, 1) f32  (same params, transposed)
    s_len, t_len: (B_pad,) int32 per-graph node counts (scalar-prefetched)
    returns: (B_pad, N_s_pad, N_t_pad) f32 dense correspondence matrices S_0
    """
    B_pad, N_s, C_in = xs_dense.shape
    N_t = xtT_dense.shape[2]
    C_out = w.shape[1]
    assert B_pad % group == 0
    assert N_s % SUBLANE == 0 and N_t % LANE == 0 and C_out % LANE == 0

    return pl.pallas_call(
        _matching_kernel,
        out_shape=jax.ShapeDtypeStruct((B_pad, N_s, N_t), jnp.float32),
        grid_spec=pltpu.PrefetchScalarGridSpec(
            num_scalar_prefetch=2,
            grid=(B_pad // group,),
            in_specs=[
                pl.BlockSpec((group, N_s, C_in), lambda gi, sl, tl: (gi, 0, 0)),
                pl.BlockSpec((group, C_in, N_t), lambda gi, sl, tl: (gi, 0, 0)),
                pl.BlockSpec((C_in, C_out), lambda gi, sl, tl: (0, 0)),
                pl.BlockSpec((1, C_out), lambda gi, sl, tl: (0, 0)),
                pl.BlockSpec((C_out, C_in), lambda gi, sl, tl: (0, 0)),
                pl.BlockSpec((C_out, 1), lambda gi, sl, tl: (0, 0)),
            ],
            out_specs=pl.BlockSpec((group, N_s, N_t),
                                   lambda gi, sl, tl: (gi, 0, 0)),
        ),
        compiler_params=pltpu.CompilerParams(
            dimension_semantics=("parallel",),
            vmem_limit_bytes=vmem_limit_bytes,
        ),
    )(s_len, t_len, xs_dense, xtT_dense, w, b, wt, bcol)


def to_dense_batch_np(x, batch, B, N_pad):
    """Host-side to_dense_batch (glue): pads per-graph node sets to N_pad rows."""
    x = np.asarray(x)
    batch = np.asarray(batch)
    total, _ = x.shape
    dense = np.zeros((B, N_pad, x.shape[1]), dtype=np.float32)
    lengths = np.zeros((B,), dtype=np.int32)
    flat_idx = []
    for i in range(total):
        b_i = int(batch[i])
        p = int(lengths[b_i])
        dense[b_i, p] = x[i]
        flat_idx.append(b_i * N_pad + p)
        lengths[b_i] += 1
    return dense, lengths, np.asarray(flat_idx, dtype=np.int32)


if __name__ == "__main__":
    key = jax.random.PRNGKey(0)
    k_xs, k_xt, k_w, k_b = jax.random.split(key, 4)

    # Small synthetic problem: B=2 graphs, source sizes [8, 6], target [8, 7]
    B = 2
    C_in = 4
    C_out = 32

    batch_s = np.array([0] * 8 + [1] * 6, dtype=np.int32)   # 14 source nodes
    batch_t = np.array([0] * 8 + [1] * 7, dtype=np.int32)   # 15 target nodes

    x_s = jax.random.normal(k_xs, (batch_s.shape[0], C_in), dtype=jnp.float32)
    x_t = jax.random.normal(k_xt, (batch_t.shape[0], C_in), dtype=jnp.float32)

    # edge info is accepted by the reference API but unused by the node-encoder psi
    edge_index_s = np.zeros((2, 1), dtype=np.int32)
    edge_attr_s = None
    edge_index_t = np.zeros((2, 1), dtype=np.int32)
    edge_attr_t = None

    # deterministic psi parameters (shared between source and target graphs)
    w = (jax.random.normal(k_w, (C_in, C_out), dtype=jnp.float32)
         / jnp.sqrt(jnp.float32(C_in)))
    b = 0.01 * jax.random.normal(k_b, (1, C_out), dtype=jnp.float32)

    # un-padded dense sizes (what torch.to_dense_batch would produce)
    N_s_actual = int(np.bincount(batch_s, minlength=B).max())   # 8
    N_t_actual = int(np.bincount(batch_t, minlength=B).max())   # 8

    # padded sizes: N_s only needs the 8-row sublane multiple; N_t / C_out are
    # padded to 128 so the output / sim matmul are lane-dense.
    N_s_pad = _round_up(N_s_actual, SUBLANE)
    N_t_pad = _round_up(N_t_actual, LANE)
    C_out_pad = _round_up(C_out, LANE)

    vmem_limit = _vmem_limit_bytes()
    GROUP = _pick_group(B, N_s_pad, N_t_pad, C_out_pad, vmem_limit)
    B_pad = _round_up(B, GROUP)

    # host-side to_dense_batch (glue)
    xs_dense, s_len, s_flat_idx = to_dense_batch_np(np.asarray(x_s), batch_s,
                                                    B_pad, N_s_pad)
    xt_dense, t_len, _ = to_dense_batch_np(np.asarray(x_t), batch_t,
                                           B_pad, N_t_pad)
    # lane-dense target layout: last dim is N_t_pad (multiple of 128)
    xtT_dense = np.ascontiguousarray(xt_dense.transpose(0, 2, 1))

    # zero-pad psi parameters to a lane-dense C_out: padded columns stay 0 after
    # ReLU and contribute nothing to the dot-similarity (semantics preserved).
    w_pad = jnp.zeros((C_in, C_out_pad), jnp.float32).at[:, :C_out].set(w)
    b_pad = jnp.zeros((1, C_out_pad), jnp.float32).at[:, :C_out].set(b)
    wt_pad = jnp.transpose(w_pad)          # (C_out_pad, C_in)
    bcol_pad = jnp.transpose(b_pad)        # (C_out_pad, 1)

    # fused Pallas kernel: psi + h_s @ h_t^T + masked softmax
    S_dense = euclidean_graph_matching_dense(
        jnp.asarray(xs_dense), jnp.asarray(xtT_dense),
        w_pad, b_pad, wt_pad, bcol_pad,
        jnp.asarray(s_len, dtype=jnp.int32), jnp.asarray(t_len, dtype=jnp.int32),
        group=GROUP, vmem_limit_bytes=vmem_limit)
    S_dense = jax.block_until_ready(S_dense)

    # S_0 = masked_softmax(S_hat, S_mask)[s_mask]  -> (total_src_nodes, N_t)
    S_0 = jnp.reshape(S_dense, (B_pad * N_s_pad, N_t_pad))[jnp.asarray(s_flat_idx)]
    S_0 = S_0[:, :N_t_actual]
    S_0 = jax.block_until_ready(S_0)

    # ---- reference check in plain JAX (un-padded weights, explicit masks) ----
    xs_d = jnp.asarray(xs_dense)
    xt_d = jnp.asarray(xt_dense)
    h_s_ref = jnp.maximum(xs_d @ w + b, 0.0)
    h_t_ref = jnp.maximum(xt_d @ w + b, 0.0)
    s_hat_ref = jnp.einsum("bnc,bmc->bnm", h_s_ref, h_t_ref)
    s_mask_np = np.arange(N_s_pad)[None, :] < s_len[:, None]
    t_mask_np = np.arange(N_t_pad)[None, :] < t_len[:, None]
    mask_ref = jnp.asarray(s_mask_np)[:, :, None] & jnp.asarray(t_mask_np)[:, None, :]
    neg = jnp.where(mask_ref, s_hat_ref, -jnp.inf)
    mx = jnp.max(neg, -1, keepdims=True)
    mx = jnp.where(jnp.isfinite(mx), mx, 0.0)
    e = jnp.where(mask_ref, jnp.exp(neg - mx), 0.0)
    den = jnp.sum(e, -1, keepdims=True)
    S_ref = jnp.where(den > 0, e / jnp.maximum(den, 1e-30), 0.0)
    S_ref_0 = jnp.reshape(S_ref, (B_pad * N_s_pad, N_t_pad))[jnp.asarray(s_flat_idx)]
    S_ref_0 = S_ref_0[:, :N_t_actual]

    assert S_0.shape == (batch_s.shape[0], N_t_actual)
    np.testing.assert_allclose(np.asarray(S_0), np.asarray(S_ref_0),
                               rtol=1e-5, atol=1e-5)

    # valid rows sum to 1 over the (masked) target nodes
    row_sums = np.asarray(S_0).sum(axis=-1)
    np.testing.assert_allclose(row_sums, np.ones_like(row_sums),
                               rtol=1e-5, atol=1e-5)

    # padded entries of the dense tensor (padded source rows, padded target
    # columns, padded graphs) must be exactly zero.
    dense_mask_np = s_mask_np[:, :, None] & t_mask_np[:, None, :]
    assert np.all(np.asarray(S_dense)[~dense_mask_np] == 0.0)

    print("KERNEL_OK")
</pallas_src>

<mosaic_0001>
module attributes {stable_mosaic.version = 11 : i64} {
  func.func @_matching_kernel(%arg0: i32, %arg1: memref<2xi32, #tpu.memory_space<smem>>, %arg2: memref<2xi32, #tpu.memory_space<smem>>, %arg3: memref<1x8x4xf32, #tpu.memory_space<vmem>>, %arg4: memref<1x4x128xf32, #tpu.memory_space<vmem>>, %arg5: memref<4x128xf32, #tpu.memory_space<vmem>>, %arg6: memref<1x128xf32, #tpu.memory_space<vmem>>, %arg7: memref<128x4xf32, #tpu.memory_space<vmem>>, %arg8: memref<128x1xf32, #tpu.memory_space<vmem>>, %arg9: memref<1x8x128xf32, #tpu.memory_space<vmem>>) attributes {dimension_semantics = [#tpu.dimension_semantics<parallel>], iteration_bounds = array<i64: 2>, scalar_prefetch = 2 : i64, scratch_operands = 0 : i64, tpu.core_type = #tpu.core_type<tc>, window_params = [{transform_indices = @transform_0, window_bounds = array<i64: 1, 8, 4>}, {transform_indices = @transform_1, window_bounds = array<i64: 1, 4, 128>}, {pipeline_mode = #tpu.pipeline_mode<synchronous>, transform_indices = @transform_2, window_bounds = array<i64: 4, 128>}, {pipeline_mode = #tpu.pipeline_mode<synchronous>, transform_indices = @transform_3, window_bounds = array<i64: 1, 128>}, {pipeline_mode = #tpu.pipeline_mode<synchronous>, transform_indices = @transform_4, window_bounds = array<i64: 128, 4>}, {pipeline_mode = #tpu.pipeline_mode<synchronous>, transform_indices = @transform_5, window_bounds = array<i64: 128, 1>}, {transform_indices = @transform_6, window_bounds = array<i64: 1, 8, 128>}]} {
    %c0 = arith.constant 0 : index
    %c0_0 = arith.constant 0 : index
    %c0_1 = arith.constant 0 : index
    %0 = vector.load %arg3[%c0, %c0_0, %c0_1] : memref<1x8x4xf32, #tpu.memory_space<vmem>>, vector<1x8x4xf32>
    %1 = vector.shape_cast %0 : vector<1x8x4xf32> to vector<8x4xf32>
    %c0_2 = arith.constant 0 : index
    %c0_3 = arith.constant 0 : index
    %2 = vector.load %arg5[%c0_2, %c0_3] : memref<4x128xf32, #tpu.memory_space<vmem>>, vector<4x128xf32>
    %cst = arith.constant dense<0.000000e+00> : vector<8x128xf32>
    %3 = tpu.matmul %1, %2, %cst {dimension_numbers = #tpu.dot_dimension_numbers<[1], [0], [0], [1], [0, 0, 1, 1], [], []>} : vector<8x4xf32>, vector<4x128xf32>, vector<8x128xf32> -> vector<8x128xf32>
    %c0_4 = arith.constant 0 : index
    %c0_5 = arith.constant 0 : index
    %4 = vector.load %arg6[%c0_4, %c0_5] : memref<1x128xf32, #tpu.memory_space<vmem>>, vector<1x128xf32>
    %5 = vector.broadcast %4 : vector<1x128xf32> to vector<8x128xf32>
    %6 = arith.addf %3, %5 : vector<8x128xf32>
    %cst_6 = arith.constant 0.000000e+00 : f32
    %7 = vector.broadcast %cst_6 : f32 to vector<8x128xf32>
    %8 = arith.maximumf %6, %7 : vector<8x128xf32>
    %c0_7 = arith.constant 0 : index
    %c0_8 = arith.constant 0 : index
    %9 = vector.load %arg8[%c0_7, %c0_8] : memref<128x1xf32, #tpu.memory_space<vmem>>, vector<128x1xf32>
    %10 = vector.shape_cast %9 : vector<128x1xf32> to vector<128x1xf32>
    %11 = vector.broadcast %10 : vector<128x1xf32> to vector<128x128xf32>
    %12 = tpu.iota {dimensions = array<i32: 0>} : vector<8x1xi32>
    %13 = tpu.iota {dimensions = array<i32: 1>} : vector<1x128xi32>
    %c1_i32 = arith.constant 1 : i32
    %14 = arith.muli %arg0, %c1_i32 : i32
    %c0_9 = arith.constant 0 : index
    %c0_10 = arith.constant 0 : index
    %15 = vector.load %arg7[%c0_9, %c0_10] : memref<128x4xf32, #tpu.memory_space<vmem>>, vector<128x4xf32>
    %c0_11 = arith.constant 0 : index
    %c0_12 = arith.constant 0 : index
    %c0_13 = arith.constant 0 : index
    %16 = vector.load %arg4[%c0_11, %c0_12, %c0_13] : memref<1x4x128xf32, #tpu.memory_space<vmem>>, vector<1x4x128xf32>
    %17 = vector.shape_cast %16 : vector<1x4x128xf32> to vector<4x128xf32>
    %cst_14 = arith.constant dense<0.000000e+00> : vector<128x128xf32>
    %18 = tpu.matmul %15, %17, %cst_14 {dimension_numbers = #tpu.dot_dimension_numbers<[1], [0], [0], [1], [0, 0, 1, 1], [], []>} : vector<128x4xf32>, vector<4x128xf32>, vector<128x128xf32> -> vector<128x128xf32>
    %19 = arith.addf %18, %11 : vector<128x128xf32>
    %cst_15 = arith.constant 0.000000e+00 : f32
    %20 = vector.broadcast %cst_15 : f32 to vector<128x128xf32>
    %21 = arith.maximumf %19, %20 : vector<128x128xf32>
    %cst_16 = arith.constant dense<0.000000e+00> : vector<8x128xf32>
    %22 = tpu.matmul %8, %21, %cst_16 {dimension_numbers = #tpu.dot_dimension_numbers<[1], [0], [0], [1], [0, 0, 1, 1], [], []>} : vector<8x128xf32>, vector<128x128xf32>, vector<8x128xf32> -> vector<8x128xf32>
    %c0_i32 = arith.constant 0 : i32
    %23 = arith.addi %14, %c0_i32 : i32
    %24 = arith.index_cast %23 : i32 to index
    %25 = memref.load %arg1[%24] : memref<2xi32, #tpu.memory_space<smem>>
    %c0_i32_17 = arith.constant 0 : i32
    %26 = arith.addi %14, %c0_i32_17 : i32
    %27 = arith.index_cast %26 : i32 to index
    %28 = memref.load %arg2[%27] : memref<2xi32, #tpu.memory_space<smem>>
    %29 = vector.broadcast %28 : i32 to vector<1x128xi32>
    %30 = arith.cmpi slt, %13, %29 : vector<1x128xi32>
    %31 = vector.broadcast %25 : i32 to vector<8x1xi32>
    %32 = arith.cmpi slt, %12, %31 : vector<8x1xi32>
    %33 = arith.extui %32 : vector<8x1xi1> to vector<8x1xi32>
    %34 = arith.sitofp %33 : vector<8x1xi32> to vector<8x1xf32>
    %cst_18 = arith.constant -1.000000e+30 : f32
    %35 = vector.shape_cast %30 : vector<1x128xi1> to vector<1x128xi1>
    %36 = vector.broadcast %35 : vector<1x128xi1> to vector<8x128xi1>
    %37 = vector.broadcast %cst_18 : f32 to vector<8x128xf32>
    %38 = arith.select %36, %22, %37 : vector<8x128xi1>, vector<8x128xf32>
    %cst_19 = arith.constant dense<0xFF800000> : vector<8xf32>
    %39 = vector.multi_reduction <maximumf>, %38, %cst_19 [1] : vector<8x128xf32> to vector<8xf32>
    %40 = vector.shape_cast %39 : vector<8xf32> to vector<8x1xf32>
    %41 = vector.broadcast %40 : vector<8x1xf32> to vector<8x128xf32>
    %42 = arith.subf %38, %41 : vector<8x128xf32>
    %43 = math.exp %42 : vector<8x128xf32>
    %cst_20 = arith.constant dense<0.000000e+00> : vector<8xf32>
    %44 = vector.multi_reduction <add>, %43, %cst_20 [1] : vector<8x128xf32> to vector<8xf32>
    %45 = vector.shape_cast %44 : vector<8xf32> to vector<8x1xf32>
    %46 = tpu.reciprocal %45 : vector<8x1xf32> -> vector<8x1xf32>
    %47 = vector.broadcast %46 : vector<8x1xf32> to vector<8x128xf32>
    %48 = arith.mulf %43, %47 : vector<8x128xf32>
    %49 = vector.broadcast %34 : vector<8x1xf32> to vector<8x128xf32>
    %50 = arith.mulf %48, %49 : vector<8x128xf32>
    %c0_21 = arith.constant 0 : index
    %c0_22 = arith.constant 0 : index
    %c0_23 = arith.constant 0 : index
    %51 = vector.load %arg9[%c0_21, %c0_22, %c0_23] : memref<1x8x128xf32, #tpu.memory_space<vmem>>, vector<1x8x128xf32>
    %52 = vector.shape_cast %51 : vector<1x8x128xf32> to vector<8x128xf32>
    %53 = vector.shape_cast %50 : vector<8x128xf32> to vector<1x8x128xf32>
    tpu.vector_store %arg9[%c0_21, %c0_22, %c0_23], %53 {strides = array<i32>} : memref<1x8x128xf32, #tpu.memory_space<vmem>>, vector<1x8x128xf32>,
    return
  }
  func.func @transform_0(%arg0: i32, %arg1: memref<2xi32, #tpu.memory_space<smem>>, %arg2: memref<2xi32, #tpu.memory_space<smem>>) -> (i32, i32, i32) {
    %c0_i32 = arith.constant 0 : i32
    %c0_i32_0 = arith.constant 0 : i32
    %c0_i32_1 = arith.constant 0 : i32
    return %arg0, %c0_i32, %c0_i32_0 : i32, i32, i32
  }
  func.func @transform_1(%arg0: i32, %arg1: memref<2xi32, #tpu.memory_space<smem>>, %arg2: memref<2xi32, #tpu.memory_space<smem>>) -> (i32, i32, i32) {
    %c0_i32 = arith.constant 0 : i32
    %c0_i32_0 = arith.constant 0 : i32
    %c0_i32_1 = arith.constant 0 : i32
    return %arg0, %c0_i32, %c0_i32_0 : i32, i32, i32
  }
  func.func @transform_2(%arg0: i32, %arg1: memref<2xi32, #tpu.memory_space<smem>>, %arg2: memref<2xi32, #tpu.memory_space<smem>>) -> (i32, i32) {
    %c0_i32 = arith.constant 0 : i32
    %c0_i32_0 = arith.constant 0 : i32
    %c0_i32_1 = arith.constant 0 : i32
    return %c0_i32, %c0_i32_0 : i32, i32
  }
  func.func @transform_3(%arg0: i32, %arg1: memref<2xi32, #tpu.memory_space<smem>>, %arg2: memref<2xi32, #tpu.memory_space<smem>>) -> (i32, i32) {
    %c0_i32 = arith.constant 0 : i32
    %c0_i32_0 = arith.constant 0 : i32
    %c0_i32_1 = arith.constant 0 : i32
    return %c0_i32, %c0_i32_0 : i32, i32
  }
  func.func @transform_4(%arg0: i32, %arg1: memref<2xi32, #tpu.memory_space<smem>>, %arg2: memref<2xi32, #tpu.memory_space<smem>>) -> (i32, i32) {
    %c0_i32 = arith.constant 0 : i32
    %c0_i32_0 = arith.constant 0 : i32
    %c0_i32_1 = arith.constant 0 : i32
    return %c0_i32, %c0_i32_0 : i32, i32
  }
  func.func @transform_5(%arg0: i32, %arg1: memref<2xi32, #tpu.memory_space<smem>>, %arg2: memref<2xi32, #tpu.memory_space<smem>>) -> (i32, i32) {
    %c0_i32 = arith.constant 0 : i32
    %c0_i32_0 = arith.constant 0 : i32
    %c0_i32_1 = arith.constant 0 : i32
    return %c0_i32, %c0_i32_0 : i32, i32
  }
  func.func @transform_6(%arg0: i32, %arg1: memref<2xi32, #tpu.memory_space<smem>>, %arg2: memref<2xi32, #tpu.memory_space<smem>>) -> (i32, i32, i32) {
    %c0_i32 = arith.constant 0 : i32
    %c0_i32_0 = arith.constant 0 : i32
    %c0_i32_1 = arith.constant 0 : i32
    return %arg0, %c0_i32, %c0_i32_0 : i32, i32, i32
  }
}

</mosaic_0001>

<llo_original>
// kernel: tpu_custom_call.1
$region0: #{tpu_custom_call.1}
  #allocation0 [shape = 'u32[]', space=smem, size = 0x4, offset = 0x4, fixed_abs, tag = 'smem constant byte address 0x4 - core index']
  #allocation1 [shape = 'u32[144,128]{1,0:T(1,128)}', space=vmem, size = 0x12000, scoped, tag = 'internal scratch']
  #allocation2 [shape = 's32[1]{0}', space=sflag, size = 0x4, scoped, tag = 'scoped memory for tpu_custom_call.1']
  #allocation3 [shape = 'u8[512]{0}', space=smem, size = 0x200, scoped, tag = 'prefetched SMEM operand 0']
  #allocation4 [shape = 'u8[512]{0}', space=smem, size = 0x200, scoped, tag = 'prefetched SMEM operand 1']
  %s0 = inlined_call_operand.vmem [shape: s32[2], index: 0, kind: input, shape index: {}]
  %s1 = inlined_call_operand.vmem [shape: s32[2], index: 1, kind: input, shape index: {}]
  %s2 = inlined_call_operand.vmem [shape: f32[2,8,4], index: 2, kind: input, shape index: {}]
  %s3 = inlined_call_operand.vmem [shape: f32[2,4,128], index: 3, kind: input, shape index: {}]
  %s4 = inlined_call_operand.vmem [shape: f32[4,128], index: 4, kind: input, shape index: {}]
  %s5 = inlined_call_operand.vmem [shape: f32[1,128], index: 5, kind: input, shape index: {}]
  %s6 = inlined_call_operand.vmem [shape: f32[128,4], index: 6, kind: input, shape index: {}]
  %s7 = inlined_call_operand.vmem [shape: f32[128,1], index: 7, kind: input, shape index: {}]
  %s8 = inlined_call_operand.hbm [shape: f32[2,8,128], index: 8, kind: output, shape index: {}]
  %s9 = sld [smem:[#allocation0]]
  $region57: #{tpu_custom_call.1} parent=0
    _
  %s11 = ssub.s32 1, %s9
  %s12 = scalar_select 0, %s11, %s9
  %s13 = sshll.u32 %s0, 4
  %s14 = int_to_ptr.vmem [resolvable:$true] %s13
  %16 = dma.vmem_to_smem %s14, 16, [#allocation3], [#allocation2]
  %s17 = sshll.u32 %s1, 4
  %s18 = int_to_ptr.vmem [resolvable:$true] %s17
  %20 = dma.vmem_to_smem %s18, 16, [#allocation4], [#allocation2]
  %21 = dma.done [#allocation2], 32
  %22 = sfence
  $region1: #{tpu_custom_call.1} parent=0
    #allocation5 [shape = 'u8[8192]{0}', space=vmem, size = 0x2000, scoped, tag = 'output window, operand 0']
    #allocation6 [shape = 's32[2]{0}', space=sflag, size = 0x8, scoped, tag = 'scoped memory for tpu_custom_call.1']
    %23 = vsyncpa [#allocation6], 0
    %s24 = scalar_lea.sflag [#allocation6], 1
    %25 = vsyncpa %s24, 0
    loop: start=0, step=1, limit=4
    $region2: #{tpu_custom_call.1} parent=1 // loop_pre_header
      _
    $region3: #{tpu_custom_call.1} parent=1 // loop_header
      %s27 = sphi 0, %s31
      %p28 = scmp.ge.s32.totalorder %s27, 4
      %s37 = sphi 0, %s39
      %s40 = sphi 0, %s37
      %s41 = sphi 0, %s40
      %s57 = sphi 0, %s41
      %s63 = sphi 0, %s65
      %s66 = sphi 0, %s63
      %s67 = sphi 0, %s66
      %s83 = sphi 0, %s67
      %s87 = sphi 0, %s87
      %s89 = sphi 0, %s87
      %s90 = sphi 0, %s89
      %s104 = sphi 0, %s90
      %s108 = sphi 0, %s108
      %s110 = sphi 0, %s108
      %s111 = sphi 0, %s110
      %s125 = sphi 0, %s111
      %s129 = sphi 0, %s129
      %s131 = sphi 0, %s129
      %s132 = sphi 0, %s131
      %s146 = sphi 0, %s132
      %s150 = sphi 0, %s150
      %s152 = sphi 0, %s150
      %s153 = sphi 0, %s152
      %s167 = sphi 0, %s153
      %s173 = sphi 0, %s175
      %s176 = sphi 0, %s173
      %s177 = sphi 0, %s176
      %s193 = sphi 0, %s177
    $region4: #{tpu_custom_call.1} parent=1 // loop_header_branch
      %30 = sbr.rel (%p28) target = $region8
    $region5: #{tpu_custom_call.1} parent=1 // loop_body
      %s32 = ssub.s32 %s27, 1
      %s33 = ssub.s32 %s27, 2
      %s34 = sadd.s32 %s27, 1
      %s35 = ssub.s32 %s27, %s34
      %p36 = scmp.eq.s32.totalorder %s35, 0
      %s38 = sadd.s32 %s37, 1
      %s39 = scalar_select %p36, %s37, %s38
      %p42 = pneg %p36
      %p43 = scmp.eq.s32.totalorder %s27, 1
      %p44 = por %p42, %p43
      %p45 = scmp.ne.s32.totalorder %s37, %s40
      %p46 = scmp.eq.s32.totalorder %s27, 0
      %p47 = por %p45, %p46
      %p48 = scmp.ne.s32.totalorder %s37, %s40
      %p49 = scmp.eq.s32.totalorder %s32, 1
      %p50 = por %p48, %p49
      %p51 = scmp.ne.s32.totalorder %s40, %s41
      %p52 = scmp.eq.s32.totalorder %s32, 0
      %p53 = por %p51, %p52
      %p54 = scmp.ne.s32.totalorder %s40, %s41
      %p55 = scmp.eq.s32.totalorder %s33, 1
      %p56 = por %p54, %p55
      %p58 = scmp.ne.s32.totalorder %s41, %s57
      %p59 = scmp.eq.s32.totalorder %s33, 0
      %p60 = por %p58, %p59
      %s61 = ssub.s32 %s27, %s34
      %p62 = scmp.eq.s32.totalorder %s61, 0
      %s64 = sadd.s32 %s63, 1
      %s65 = scalar_select %p62, %s63, %s64
      %p68 = pneg %p62
      %p69 = scmp.eq.s32.totalorder %s27, 1
      %p70 = por %p68, %p69
      %p71 = scmp.ne.s32.totalorder %s63, %s66
      %p72 = scmp.eq.s32.totalorder %s27, 0
      %p73 = por %p71, %p72
      %p74 = scmp.ne.s32.totalorder %s63, %s66
      %p75 = scmp.eq.s32.totalorder %s32, 1
      %p76 = por %p74, %p75
      %p77 = scmp.ne.s32.totalorder %s66, %s67
      %p78 = scmp.eq.s32.totalorder %s32, 0
      %p79 = por %p77, %p78
      %p80 = scmp.ne.s32.totalorder %s66, %s67
      %p81 = scmp.eq.s32.totalorder %s33, 1
      %p82 = por %p80, %p81
      %p84 = scmp.ne.s32.totalorder %s67, %s83
      %p85 = scmp.eq.s32.totalorder %s33, 0
      %p86 = por %p84, %p85
      %s88 = sadd.s32 %s87, 1
      %p91 = scmp.eq.s32.totalorder %s27, 1
      %p92 = scmp.ne.s32.totalorder %s87, %s89
      %p93 = scmp.eq.s32.totalorder %s27, 0
      %p94 = por %p92, %p93
      %p95 = scmp.ne.s32.totalorder %s87, %s89
      %p96 = scmp.eq.s32.totalorder %s32, 1
      %p97 = por %p95, %p96
      %p98 = scmp.ne.s32.totalorder %s89, %s90
      %p99 = scmp.eq.s32.totalorder %s32, 0
      %p100 = por %p98, %p99
      %p101 = scmp.ne.s32.totalorder %s89, %s90
      %p102 = scmp.eq.s32.totalorder %s33, 1
      %p103 = por %p101, %p102
      %p105 = scmp.ne.s32.totalorder %s90, %s104
      %p106 = scmp.eq.s32.totalorder %s33, 0
      %p107 = por %p105, %p106
      %s109 = sadd.s32 %s108, 1
      %p112 = scmp.eq.s32.totalorder %s27, 1
      %p113 = scmp.ne.s32.totalorder %s108, %s110
      %p114 = scmp.eq.s32.totalorder %s27, 0
      %p115 = por %p113, %p114
      %p116 = scmp.ne.s32.totalorder %s108, %s110
      %p117 = scmp.eq.s32.totalorder %s32, 1
      %p118 = por %p116, %p117
      %p119 = scmp.ne.s32.totalorder %s110, %s111
      %p120 = scmp.eq.s32.totalorder %s32, 0
      %p121 = por %p119, %p120
      %p122 = scmp.ne.s32.totalorder %s110, %s111
      %p123 = scmp.eq.s32.totalorder %s33, 1
      %p124 = por %p122, %p123
      %p126 = scmp.ne.s32.totalorder %s111, %s125
      %p127 = scmp.eq.s32.totalorder %s33, 0
      %p128 = por %p126, %p127
      %s130 = sadd.s32 %s129, 1
      %p133 = scmp.eq.s32.totalorder %s27, 1
      %p134 = scmp.ne.s32.totalorder %s129, %s131
      %p135 = scmp.eq.s32.totalorder %s27, 0
      %p136 = por %p134, %p135
      %p137 = scmp.ne.s32.totalorder %s129, %s131
      %p138 = scmp.eq.s32.totalorder %s32, 1
      %p139 = por %p137, %p138
      %p140 = scmp.ne.s32.totalorder %s131, %s132
      %p141 = scmp.eq.s32.totalorder %s32, 0
      %p142 = por %p140, %p141
      %p143 = scmp.ne.s32.totalorder %s131, %s132
      %p144 = scmp.eq.s32.totalorder %s33, 1
      %p145 = por %p143, %p144
      %p147 = scmp.ne.s32.totalorder %s132, %s146
      %p148 = scmp.eq.s32.totalorder %s33, 0
      %p149 = por %p147, %p148
      %s151 = sadd.s32 %s150, 1
      %p154 = scmp.eq.s32.totalorder %s27, 1
      %p155 = scmp.ne.s32.totalorder %s150, %s152
      %p156 = scmp.eq.s32.totalorder %s27, 0
      %p157 = por %p155, %p156
      %p158 = scmp.ne.s32.totalorder %s150, %s152
      %p159 = scmp.eq.s32.totalorder %s32, 1
      %p160 = por %p158, %p159
      %p161 = scmp.ne.s32.totalorder %s152, %s153
      %p162 = scmp.eq.s32.totalorder %s32, 0
      %p163 = por %p161, %p162
      %p164 = scmp.ne.s32.totalorder %s152, %s153
      %p165 = scmp.eq.s32.totalorder %s33, 1
      %p166 = por %p164, %p165
      %p168 = scmp.ne.s32.totalorder %s153, %s167
      %p169 = scmp.eq.s32.totalorder %s33, 0
      %p170 = por %p168, %p169
      %s171 = ssub.s32 %s27, %s34
      %p172 = scmp.eq.s32.totalorder %s171, 0
      %s174 = sadd.s32 %s173, 1
      %s175 = scalar_select %p172, %s173, %s174
      %p178 = pneg %p172
      %p179 = scmp.eq.s32.totalorder %s27, 1
      %p180 = por %p178, %p179
      %p181 = scmp.ne.s32.totalorder %s173, %s176
      %p182 = scmp.eq.s32.totalorder %s27, 0
      %p183 = por %p181, %p182
      %p184 = scmp.ne.s32.totalorder %s173, %s176
      %p185 = scmp.eq.s32.totalorder %s32, 1
      %p186 = por %p184, %p185
      %p187 = scmp.ne.s32.totalorder %s176, %s177
      %p188 = scmp.eq.s32.totalorder %s32, 0
      %p189 = por %p187, %p188
      %p190 = scmp.ne.s32.totalorder %s176, %s177
      %p191 = scmp.eq.s32.totalorder %s33, 1
      %p192 = por %p190, %p191
      %p194 = scmp.ne.s32.totalorder %s177, %s193
      %p195 = scmp.eq.s32.totalorder %s33, 0
      %p196 = por %p194, %p195
      %p197 = scmp.le.s32.totalorder 1, %s27
      %p198 = scmp.lt.s32.totalorder %s27, 3
      %p199 = pnand %p197, %p198
      %p200 = pneg %p199
      // Predicated region
      $region9: #{tpu_custom_call.1} parent=5 // pred_check
        _
      $region10: #{tpu_custom_call.1} parent=5 // pred_check_branch
        %202 = sbr.rel (%p199) target = $region12
      $region11: #{tpu_custom_call.1} parent=5 // pred_region
        %s203 = ssub.s32 %s27, 1
        // Predicated region
        $region13: #{tpu_custom_call.1} parent=11 // pred_check
          %p204 = pneg %p100
        $region14: #{tpu_custom_call.1} parent=11 // pred_check_branch
          %206 = sbr.rel (%p204) target = $region16
        $region15: #{tpu_custom_call.1} parent=11 // pred_region
          _
        $region16: #{tpu_custom_call.1} parent=11 // pred_fallthru
          _
        // Predicated region
        $region17: #{tpu_custom_call.1} parent=11 // pred_check
          %p207 = pneg %p121
        $region18: #{tpu_custom_call.1} parent=11 // pred_check_branch
          %209 = sbr.rel (%p207) target = $region20
        $region19: #{tpu_custom_call.1} parent=11 // pred_region
          _
        $region20: #{tpu_custom_call.1} parent=11 // pred_fallthru
          _
        // Predicated region
        $region21: #{tpu_custom_call.1} parent=11 // pred_check
          %p210 = pneg %p142
        $region22: #{tpu_custom_call.1} parent=11 // pred_check_branch
          %212 = sbr.rel (%p210) target = $region24
        $region23: #{tpu_custom_call.1} parent=11 // pred_region
          _
        $region24: #{tpu_custom_call.1} parent=11 // pred_fallthru
          _
        // Predicated region
        $region25: #{tpu_custom_call.1} parent=11 // pred_check
          %p213 = pneg %p163
        $region26: #{tpu_custom_call.1} parent=11 // pred_check_branch
          %215 = sbr.rel (%p213) target = $region28
        $region27: #{tpu_custom_call.1} parent=11 // pred_region
          _
        $region28: #{tpu_custom_call.1} parent=11 // pred_fallthru
          _
      $region12: #{tpu_custom_call.1} parent=5 // pred_fallthru
        _
      %p216 = scmp.lt.s32.totalorder %s27, 2
      // Predicated region
      $region29: #{tpu_custom_call.1} parent=5 // pred_check
        %p217 = pneg %p216
      $region30: #{tpu_custom_call.1} parent=5 // pred_check_branch
        %219 = sbr.rel (%p217) target = $region32
      $region31: #{tpu_custom_call.1} parent=5 // pred_region
        // Predicated region
        $region33: #{tpu_custom_call.1} parent=31 // pred_check
          %p220 = pneg %p47
        $region34: #{tpu_custom_call.1} parent=31 // pred_check_branch
          %222 = sbr.rel (%p220) target = $region36
        $region35: #{tpu_custom_call.1} parent=31 // pred_region
          %p223 = scmp.lt.s32.totalorder %s27, 1
          %s224 = scalar_select %p223, %s27, 1
          %s225 = smul.addr %s224, 8
          %s226 = scalar_lea.vmem %s2, %s225
        $region36: #{tpu_custom_call.1} parent=31 // pred_fallthru
          _
        // Predicated region
        $region37: #{tpu_custom_call.1} parent=31 // pred_check
          %p227 = pneg %p73
        $region38: #{tpu_custom_call.1} parent=31 // pred_check_branch
          %229 = sbr.rel (%p227) target = $region40
        $region39: #{tpu_custom_call.1} parent=31 // pred_region
          %p230 = scmp.lt.s32.totalorder %s27, 1
          %s231 = scalar_select %p230, %s27, 1
          %s232 = smul.addr %s231, 4
          %s233 = scalar_lea.vmem %s3, %s232
        $region40: #{tpu_custom_call.1} parent=31 // pred_fallthru
          _
      $region32: #{tpu_custom_call.1} parent=5 // pred_fallthru
        _
      %p234 = scmp.le.s32.totalorder 1, %s27
      %p235 = scmp.lt.s32.totalorder %s27, 3
      %p236 = pnand %p234, %p235
      %p237 = pneg %p236
      // Predicated region
      $region41: #{tpu_custom_call.1} parent=5 // pred_check
        _
      $region42: #{tpu_custom_call.1} parent=5 // pred_check_branch
        %239 = sbr.rel (%p236) target = $region44
      $region43: #{tpu_custom_call.1} parent=5 // pred_region
        %s240 = ssub.s32 %s27, 1
        %p241 = scmp.lt.s32.totalorder %s32, 1
        %s242 = scalar_select %p241, %s32, 1
        %s243 = smul.addr %s242, 8
        %s244 = scalar_lea.vmem %s2, %s243
        %p245 = pneg %p53
        %p246 = pneg %p50
        %p247 = scmp.lt.s32.totalorder %s32, 1
        %s248 = scalar_select %p247, %s32, 1
        %s249 = smul.addr %s248, 4
        %s250 = scalar_lea.vmem %s3, %s249
        %p251 = pneg %p79
        %p252 = pneg %p76
        %p253 = pneg %p100
        %p254 = pneg %p97
        %p255 = pneg %p121
        %p256 = pneg %p118
        %p257 = pneg %p142
        %p258 = pneg %p139
        %p259 = pneg %p163
        %p260 = pneg %p160
        %p261 = pneg %p189
        %p262 = pneg %p186
        %s263 = sand.u32 %s176, 1
        %s264 = scalar_lea.sflag [#allocation6], %s263
        %s265 = sand.u32 %s176, 1
        %s266 = smul.addr %s265, 8
        %s267 = scalar_lea.vmem [#allocation5], %s266
        %p268 = scmp.lt.s32.totalorder %s32, 1
        %s269 = scalar_select %p268, %s32, 1
        %s270 = smul.addr %s269, 8
        %s271 = scalar_lea.vmem %s2, %s270
        %p272 = scmp.lt.s32.totalorder %s32, 1
        %s273 = scalar_select %p272, %s32, 1
        %s274 = smul.addr %s273, 4
        %s275 = scalar_lea.vmem %s3, %s274
        %v276 = vld [vmem:[%s271] sm:$0xff]
        %v277 = vld [vmem:[%s4] sm:$0xf]
        %v278 = vld [vmem:[%s5] sm:$0x1]
        %v280 = vlaneseq
        %v281 = vshrl.u32 %v280, 7
        %v282 = vsub.s32 0, %v281
        %v283 = vrot.slane %v278, %v282
        %vm285 = vcmask 31744
        %v287 = vsel %vm285, %v276, 0
        %vm289 = vcmask 1043456
        %v291 = vsel %vm289, %v277, 0
        %293 = vmatprep.subr.mxu0 0.0
        %294 = vmatpush1.msra.mxu0 %v291
        %295 = vmatprep.subr.mxu0 0.0
        %296 = vmatpush1.msra.mxu0 0.0
        %297 = vmatprep.subr.mxu0 0.0
        %298 = vmatpush1.msra.mxu0 0.0
        %299 = vmatprep.subr.mxu0 0.0
        %300 = vmatpush1.msra.mxu0 0.0
        %301 = vmatprep.subr.mxu0 0.0
        %302 = vmatpush1.msra.mxu0 0.0
        %303 = vmatprep.subr.mxu0 0.0
        %304 = vmatpush1.msra.mxu0 0.0
        %305 = vmatprep.subr.mxu0 0.0
        %306 = vmatpush1.msra.mxu0 0.0
        %307 = vmatprep.subr.mxu0 0.0
        %308 = vmatpush1.msra.mxu0 0.0
        %309 = vmatprep.subr.mxu0 0.0
        %310 = vmatpush1.msra.mxu0 0.0
        %311 = vmatprep.subr.mxu0 0.0
        %312 = vmatpush1.msra.mxu0 0.0
        %313 = vmatprep.subr.mxu0 0.0
        %314 = vmatpush1.msra.mxu0 0.0
        %315 = vmatprep.subr.mxu0 0.0
        %316 = vmatpush1.msra.mxu0 0.0
        %317 = vmatprep.subr.mxu0 0.0
        %318 = vmatpush1.msra.mxu0 0.0
        %319 = vmatprep.subr.mxu0 0.0
        %320 = vmatpush1.msra.mxu0 0.0
        %321 = vmatprep.subr.mxu0 0.0
        %322 = vmatpush1.msra.mxu0 0.0
        %323 = vmatprep.subr.mxu0 0.0
        %324 = vmatpush1.msra.mxu0 0.0
        %325 = vmatprep.subr.mxu0 0.0
        %326 = vmatpush1.msra.mxu0 0.0
        %327 = vmatprep.subr.mxu0 0.0
        %328 = vmatpush1.msra.mxu0 0.0
        %329 = vmatprep.subr.mxu0 0.0
        %330 = vmatpush1.msra.mxu0 0.0
        %331 = vmatprep.subr.mxu0 0.0
        %332 = vmatpush1.msra.mxu0 0.0
        %333 = vmatprep.subr.mxu0 0.0
        %334 = vmatpush1.msra.mxu0 0.0
        %335 = vmatprep.subr.mxu0 0.0
        %336 = vmatpush1.msra.mxu0 0.0
        %337 = vmatprep.subr.mxu0 0.0
        %338 = vmatpush1.msra.mxu0 0.0
        %339 = vmatprep.subr.mxu0 0.0
        %340 = vmatpush1.msra.mxu0 0.0
        %341 = vmatprep.subr.mxu0 0.0
        %342 = vmatpush1.msra.mxu0 0.0
        %343 = vmatprep.subr.mxu0 0.0
        %344 = vmatpush1.msra.mxu0 0.0
        %345 = vmatprep.subr.mxu0 0.0
        %346 = vmatpush1.msra.mxu0 0.0
        %347 = vmatprep.subr.mxu0 0.0
        %348 = vmatpush1.msra.mxu0 0.0
        %349 = vmatprep.subr.mxu0 0.0
        %350 = vmatpush1.msra.mxu0 0.0
        %351 = vmatprep.subr.mxu0 0.0
        %352 = vmatpush1.msra.mxu0 0.0
        %353 = vmatprep.subr.mxu0 0.0
        %354 = vmatpush1.msra.mxu0 0.0
        %355 = vmatprep.subr.mxu0 0.0
        %356 = vmatpush1.msra.mxu0 0.0
        %357 = vmatprep.mubr.f32.mxu0 0.0
        %358 = vmatmul.mubr.f32.gmra.mrb[0].mxu0 %v287
        %v359 = vpop.f32.mrb[0].mxu0
        %v360 = vadd.f32 %v283, %v359
        %v361 = vpop.f32.mrb[0].mxu0
        %362 = vdwg.mxu0
        %v363 = vmax.f32 %v360, 0.0
        %v364 = vld [vmem:[%s7] sm:$0xff]
        %v365 = vld [vmem:[%s7 + $0x8] sm:$0xff]
        %v366 = vld [vmem:[%s7 + $0x10] sm:$0xff]
        %v367 = vld [vmem:[%s7 + $0x18] sm:$0xff]
        %v368 = vld [vmem:[%s7 + $0x20] sm:$0xff]
        %v369 = vld [vmem:[%s7 + $0x28] sm:$0xff]
        %v370 = vld [vmem:[%s7 + $0x30] sm:$0xff]
        %v371 = vld [vmem:[%s7 + $0x38] sm:$0xff]
        %v372 = vld [vmem:[%s7 + $0x40] sm:$0xff]
        %v373 = vld [vmem:[%s7 + $0x48] sm:$0xff]
        %v374 = vld [vmem:[%s7 + $0x50] sm:$0xff]
        %v375 = vld [vmem:[%s7 + $0x58] sm:$0xff]
        %v376 = vld [vmem:[%s7 + $0x60] sm:$0xff]
        %v377 = vld [vmem:[%s7 + $0x68] sm:$0xff]
        %v378 = vld [vmem:[%s7 + $0x70] sm:$0xff]
        %v379 = vld [vmem:[%s7 + $0x78] sm:$0xff]
        %381 = vset.pattern.permute.xlu0 0
        %382 = vperm.xlu0 %381, %v364
        %v383 = vpop.permute.xlu0 %382
        %386 = vset.pattern.permute.xlu0 0
        %387 = vperm.xlu0 %386, %v365
        %v388 = vpop.permute.xlu0 %387
        %391 = vset.pattern.permute.xlu0 0
        %392 = vperm.xlu0 %391, %v366
        %v393 = vpop.permute.xlu0 %392
        %396 = vset.pattern.permute.xlu0 0
        %397 = vperm.xlu0 %396, %v367
        %v398 = vpop.permute.xlu0 %397
        %401 = vset.pattern.permute.xlu0 0
        %402 = vperm.xlu0 %401, %v368
        %v403 = vpop.permute.xlu0 %402
        %406 = vset.pattern.permute.xlu0 0
        %407 = vperm.xlu0 %406, %v369
        %v408 = vpop.permute.xlu0 %407
        %411 = vset.pattern.permute.xlu0 0
        %412 = vperm.xlu0 %411, %v370
        %v413 = vpop.permute.xlu0 %412
        %416 = vset.pattern.permute.xlu0 0
        %417 = vperm.xlu0 %416, %v371
        %v418 = vpop.permute.xlu0 %417
        %421 = vset.pattern.permute.xlu0 0
        %422 = vperm.xlu0 %421, %v372
        %v423 = vpop.permute.xlu0 %422
        %426 = vset.pattern.permute.xlu0 0
        %427 = vperm.xlu0 %426, %v373
        %v428 = vpop.permute.xlu0 %427
        %431 = vset.pattern.permute.xlu0 0
        %432 = vperm.xlu0 %431, %v374
        %v433 = vpop.permute.xlu0 %432
        %436 = vset.pattern.permute.xlu0 0
        %437 = vperm.xlu0 %436, %v375
        %v438 = vpop.permute.xlu0 %437
        %441 = vset.pattern.permute.xlu0 0
        %442 = vperm.xlu0 %441, %v376
        %v443 = vpop.permute.xlu0 %442
        %446 = vset.pattern.permute.xlu0 0
        %447 = vperm.xlu0 %446, %v377
        %v448 = vpop.permute.xlu0 %447
        %451 = vset.pattern.permute.xlu0 0
        %452 = vperm.xlu0 %451, %v378
        %v453 = vpop.permute.xlu0 %452
        %456 = vset.pattern.permute.xlu0 0
        %457 = vperm.xlu0 %456, %v379
        %v458 = vpop.permute.xlu0 %457
        %v460 = vlaneseq
        %v461 = vshrl.u32 %v460, 7
        %v462 = vlaneseq
        %v463 = vand.u32 %v462, 127
        %v464 = vld [vmem:[%s6] sm:$0xff]
        %v465 = vld [vmem:[%s6 + $0x8] sm:$0xff]
        %v466 = vld [vmem:[%s6 + $0x10] sm:$0xff]
        %v467 = vld [vmem:[%s6 + $0x18] sm:$0xff]
        %v468 = vld [vmem:[%s6 + $0x20] sm:$0xff]
        %v469 = vld [vmem:[%s6 + $0x28] sm:$0xff]
        %v470 = vld [vmem:[%s6 + $0x30] sm:$0xff]
        %v471 = vld [vmem:[%s6 + $0x38] sm:$0xff]
        %v472 = vld [vmem:[%s6 + $0x40] sm:$0xff]
        %v473 = vld [vmem:[%s6 + $0x48] sm:$0xff]
        %v474 = vld [vmem:[%s6 + $0x50] sm:$0xff]
        %v475 = vld [vmem:[%s6 + $0x58] sm:$0xff]
        %v476 = vld [vmem:[%s6 + $0x60] sm:$0xff]
        %v477 = vld [vmem:[%s6 + $0x68] sm:$0xff]
        %v478 = vld [vmem:[%s6 + $0x70] sm:$0xff]
        %v479 = vld [vmem:[%s6 + $0x78] sm:$0xff]
        %v480 = vld [vmem:[%s275] sm:$0xf]
        %v482 = vsel %vm285, %v464, 0
        %v485 = vsel %vm285, %v465, 0
        %v488 = vsel %vm285, %v466, 0
        %v491 = vsel %vm285, %v467, 0
        %v494 = vsel %vm285, %v468, 0
        %v497 = vsel %vm285, %v469, 0
        %v500 = vsel %vm285, %v470, 0
        %v503 = vsel %vm285, %v471, 0
        %v506 = vsel %vm285, %v472, 0
        %v509 = vsel %vm285, %v473, 0
        %v512 = vsel %vm285, %v474, 0
        %v515 = vsel %vm285, %v475, 0
        %v518 = vsel %vm285, %v476, 0
        %v521 = vsel %vm285, %v477, 0
        %v524 = vsel %vm285, %v478, 0
        %v527 = vsel %vm285, %v479, 0
        %v530 = vsel %vm289, %v480, 0
        %532 = vmatprep.subr.mxu0 0.0
        %533 = vmatpush1.msra.mxu0 %v530
        %534 = vmatprep.subr.mxu0 0.0
        %535 = vmatpush1.msra.mxu0 0.0
        %536 = vmatprep.subr.mxu0 0.0
        %537 = vmatpush1.msra.mxu0 0.0
        %538 = vmatprep.subr.mxu0 0.0
        %539 = vmatpush1.msra.mxu0 0.0
        %540 = vmatprep.subr.mxu0 0.0
        %541 = vmatpush1.msra.mxu0 0.0
        %542 = vmatprep.subr.mxu0 0.0
        %543 = vmatpush1.msra.mxu0 0.0
        %544 = vmatprep.subr.mxu0 0.0
        %545 = vmatpush1.msra.mxu0 0.0
        %546 = vmatprep.subr.mxu0 0.0
        %547 = vmatpush1.msra.mxu0 0.0
        %548 = vmatprep.subr.mxu0 0.0
        %549 = vmatpush1.msra.mxu0 0.0
        %550 = vmatprep.subr.mxu0 0.0
        %551 = vmatpush1.msra.mxu0 0.0
        %552 = vmatprep.subr.mxu0 0.0
        %553 = vmatpush1.msra.mxu0 0.0
        %554 = vmatprep.subr.mxu0 0.0
        %555 = vmatpush1.msra.mxu0 0.0
        %556 = vmatprep.subr.mxu0 0.0
        %557 = vmatpush1.msra.mxu0 0.0
        %558 = vmatprep.subr.mxu0 0.0
        %559 = vmatpush1.msra.mxu0 0.0
        %560 = vmatprep.subr.mxu0 0.0
        %561 = vmatpush1.msra.mxu0 0.0
        %562 = vmatprep.subr.mxu0 0.0
        %563 = vmatpush1.msra.mxu0 0.0
        %564 = vmatprep.subr.mxu0 0.0
        %565 = vmatpush1.msra.mxu0 0.0
        %566 = vmatprep.subr.mxu0 0.0
        %567 = vmatpush1.msra.mxu0 0.0
        %568 = vmatprep.subr.mxu0 0.0
        %569 = vmatpush1.msra.mxu0 0.0
        %570 = vmatprep.subr.mxu0 0.0
        %571 = vmatpush1.msra.mxu0 0.0
        %572 = vmatprep.subr.mxu0 0.0
        %573 = vmatpush1.msra.mxu0 0.0
        %574 = vmatprep.subr.mxu0 0.0
        %575 = vmatpush1.msra.mxu0 0.0
        %576 = vmatprep.subr.mxu0 0.0
        %577 = vmatpush1.msra.mxu0 0.0
        %578 = vmatprep.subr.mxu0 0.0
        %579 = vmatpush1.msra.mxu0 0.0
        %580 = vmatprep.subr.mxu0 0.0
        %581 = vmatpush1.msra.mxu0 0.0
        %582 = vmatprep.subr.mxu0 0.0
        %583 = vmatpush1.msra.mxu0 0.0
        %584 = vmatprep.subr.mxu0 0.0
        %585 = vmatpush1.msra.mxu0 0.0
        %586 = vmatprep.subr.mxu0 0.0
        %587 = vmatpush1.msra.mxu0 0.0
        %588 = vmatprep.subr.mxu0 0.0
        %589 = vmatpush1.msra.mxu0 0.0
        %590 = vmatprep.subr.mxu0 0.0
        %591 = vmatpush1.msra.mxu0 0.0
        %592 = vmatprep.subr.mxu0 0.0
        %593 = vmatpush1.msra.mxu0 0.0
        %594 = vmatprep.subr.mxu0 0.0
        %595 = vmatpush1.msra.mxu0 0.0
        %596 = vmatprep.mubr.f32.mxu0 0.0
        %597 = vmatmul.mubr.f32.gmra.mrb[0].mxu0 %v482
        %v598 = vpop.f32.mrb[0].mxu0
        %v599 = vadd.f32 %v383, %v598
        %v600 = vpop.f32.mrb[0].mxu0
        %601 = vmatprep.mubr.f32.mxu0 0.0
        %602 = vmatmul.mubr.f32.gmra.mrb[0].mxu0 %v485
        %v603 = vpop.f32.mrb[0].mxu0
        %v604 = vadd.f32 %v388, %v603
        %v605 = vpop.f32.mrb[0].mxu0
        %606 = vmatprep.mubr.f32.mxu0 0.0
        %607 = vmatmul.mubr.f32.gmra.mrb[0].mxu0 %v488
        %v608 = vpop.f32.mrb[0].mxu0
        %v609 = vadd.f32 %v393, %v608
        %v610 = vpop.f32.mrb[0].mxu0
        %611 = vmatprep.mubr.f32.mxu0 0.0
        %612 = vmatmul.mubr.f32.gmra.mrb[0].mxu0 %v491
        %v613 = vpop.f32.mrb[0].mxu0
        %v614 = vadd.f32 %v398, %v613
        %v615 = vpop.f32.mrb[0].mxu0
        %616 = vmatprep.mubr.f32.mxu0 0.0
        %617 = vmatmul.mubr.f32.gmra.mrb[0].mxu0 %v494
        %v618 = vpop.f32.mrb[0].mxu0
        %v619 = vadd.f32 %v403, %v618
        %v620 = vpop.f32.mrb[0].mxu0
        %621 = vmatprep.mubr.f32.mxu0 0.0
        %622 = vmatmul.mubr.f32.gmra.mrb[0].mxu0 %v497
        %v623 = vpop.f32.mrb[0].mxu0
        %v624 = vadd.f32 %v408, %v623
        %v625 = vpop.f32.mrb[0].mxu0
        %626 = vmatprep.mubr.f32.mxu0 0.0
        %627 = vmatmul.mubr.f32.gmra.mrb[0].mxu0 %v500
        %v628 = vpop.f32.mrb[0].mxu0
        %v629 = vadd.f32 %v413, %v628
        %v630 = vpop.f32.mrb[0].mxu0
        %631 = vmatprep.mubr.f32.mxu0 0.0
        %632 = vmatmul.mubr.f32.gmra.mrb[0].mxu0 %v503
        %v633 = vpop.f32.mrb[0].mxu0
        %v634 = vadd.f32 %v418, %v633
        %v635 = vpop.f32.mrb[0].mxu0
        %636 = vmatprep.mubr.f32.mxu0 0.0
        %637 = vmatmul.mubr.f32.gmra.mrb[0].mxu0 %v506
        %v638 = vpop.f32.mrb[0].mxu0
        %v639 = vadd.f32 %v423, %v638
        %v640 = vpop.f32.mrb[0].mxu0
        %641 = vmatprep.mubr.f32.mxu0 0.0
        %642 = vmatmul.mubr.f32.gmra.mrb[0].mxu0 %v509
        %v643 = vpop.f32.mrb[0].mxu0
        %v644 = vadd.f32 %v428, %v643
        %v645 = vpop.f32.mrb[0].mxu0
        %646 = vmatprep.mubr.f32.mxu0 0.0
        %647 = vmatmul.mubr.f32.gmra.mrb[0].mxu0 %v512
        %v648 = vpop.f32.mrb[0].mxu0
        %v649 = vadd.f32 %v433, %v648
        %v650 = vpop.f32.mrb[0].mxu0
        %651 = vmatprep.mubr.f32.mxu0 0.0
        %652 = vmatmul.mubr.f32.gmra.mrb[0].mxu0 %v515
        %v653 = vpop.f32.mrb[0].mxu0
        %v654 = vadd.f32 %v438, %v653
        %v655 = vpop.f32.mrb[0].mxu0
        %656 = vmatprep.mubr.f32.mxu0 0.0
        %657 = vmatmul.mubr.f32.gmra.mrb[0].mxu0 %v518
        %v658 = vpop.f32.mrb[0].mxu0
        %v659 = vadd.f32 %v443, %v658
        %v660 = vpop.f32.mrb[0].mxu0
        %661 = vmatprep.mubr.f32.mxu0 0.0
        %662 = vmatmul.mubr.f32.gmra.mrb[0].mxu0 %v521
        %v663 = vpop.f32.mrb[0].mxu0
        %v664 = vadd.f32 %v448, %v663
        %v665 = vpop.f32.mrb[0].mxu0
        %666 = vmatprep.mubr.f32.mxu0 0.0
        %667 = vmatmul.mubr.f32.gmra.mrb[0].mxu0 %v524
        %v668 = vpop.f32.mrb[0].mxu0
        %v669 = vadd.f32 %v453, %v668
        %v670 = vpop.f32.mrb[0].mxu0
        %671 = vmatprep.mubr.f32.mxu0 0.0
        %672 = vmatmul.mubr.f32.gmra.mrb[0].mxu0 %v527
        %v673 = vpop.f32.mrb[0].mxu0
        %v674 = vadd.f32 %v458, %v673
        %v675 = vpop.f32.mrb[0].mxu0
        %676 = vdwg.mxu0
        %v677 = vmax.f32 %v599, 0.0
        %v678 = vmax.f32 %v604, 0.0
        %v679 = vmax.f32 %v609, 0.0
        %v680 = vmax.f32 %v614, 0.0
        %v681 = vmax.f32 %v619, 0.0
        %v682 = vmax.f32 %v624, 0.0
        %v683 = vmax.f32 %v629, 0.0
        %v684 = vmax.f32 %v634, 0.0
        %v685 = vmax.f32 %v639, 0.0
        %v686 = vmax.f32 %v644, 0.0
        %v687 = vmax.f32 %v649, 0.0
        %v688 = vmax.f32 %v654, 0.0
        %v689 = vmax.f32 %v659, 0.0
        %v690 = vmax.f32 %v664, 0.0
        %v691 = vmax.f32 %v669, 0.0
        %v692 = vmax.f32 %v674, 0.0
        %693 = vmatprep.subr.mxu0 0.0
        %694 = vmatpush1.msra.mxu0 %v677
        %695 = vmatprep.subr.mxu0 0.0
        %696 = vmatpush1.msra.mxu0 %v678
        %697 = vmatprep.subr.mxu0 0.0
        %698 = vmatpush1.msra.mxu0 %v679
        %699 = vmatprep.subr.mxu0 0.0
        %700 = vmatpush1.msra.mxu0 %v680
        %701 = vmatprep.subr.mxu0 0.0
        %702 = vmatpush1.msra.mxu0 %v681
        %703 = vmatprep.subr.mxu0 0.0
        %704 = vmatpush1.msra.mxu0 %v682
        %705 = vmatprep.subr.mxu0 0.0
        %706 = vmatpush1.msra.mxu0 %v683
        %707 = vmatprep.subr.mxu0 0.0
        %708 = vmatpush1.msra.mxu0 %v684
        %709 = vmatprep.subr.mxu0 0.0
        %710 = vmatpush1.msra.mxu0 %v685
        %711 = vmatprep.subr.mxu0 0.0
        %712 = vmatpush1.msra.mxu0 %v686
        %713 = vmatprep.subr.mxu0 0.0
        %714 = vmatpush1.msra.mxu0 %v687
        %715 = vmatprep.subr.mxu0 0.0
        %716 = vmatpush1.msra.mxu0 %v688
        %717 = vmatprep.subr.mxu0 0.0
        %718 = vmatpush1.msra.mxu0 %v689
        %719 = vmatprep.subr.mxu0 0.0
        %720 = vmatpush1.msra.mxu0 %v690
        %721 = vmatprep.subr.mxu0 0.0
        %722 = vmatpush1.msra.mxu0 %v691
        %723 = vmatprep.subr.mxu0 0.0
        %724 = vmatpush1.msra.mxu0 %v692
        %725 = vmatprep.subr.mxu0 0.0
        %726 = vmatpush1.msra.mxu0 0.0
        %727 = vmatprep.subr.mxu0 0.0
        %728 = vmatpush1.msra.mxu0 0.0
        %729 = vmatprep.subr.mxu0 0.0
        %730 = vmatpush1.msra.mxu0 0.0
        %731 = vmatprep.subr.mxu0 0.0
        %732 = vmatpush1.msra.mxu0 0.0
        %733 = vmatprep.subr.mxu0 0.0
        %734 = vmatpush1.msra.mxu0 0.0
        %735 = vmatprep.subr.mxu0 0.0
        %736 = vmatpush1.msra.mxu0 0.0
        %737 = vmatprep.subr.mxu0 0.0
        %738 = vmatpush1.msra.mxu0 0.0
        %739 = vmatprep.subr.mxu0 0.0
        %740 = vmatpush1.msra.mxu0 0.0
        %741 = vmatprep.subr.mxu0 0.0
        %742 = vmatpush1.msra.mxu0 0.0
        %743 = vmatprep.subr.mxu0 0.0
        %744 = vmatpush1.msra.mxu0 0.0
        %745 = vmatprep.subr.mxu0 0.0
        %746 = vmatpush1.msra.mxu0 0.0
        %747 = vmatprep.subr.mxu0 0.0
        %748 = vmatpush1.msra.mxu0 0.0
        %749 = vmatprep.subr.mxu0 0.0
        %750 = vmatpush1.msra.mxu0 0.0
        %751 = vmatprep.subr.mxu0 0.0
        %752 = vmatpush1.msra.mxu0 0.0
        %753 = vmatprep.subr.mxu0 0.0
        %754 = vmatpush1.msra.mxu0 0.0
        %755 = vmatprep.subr.mxu0 0.0
        %756 = vmatpush1.msra.mxu0 0.0
        %757 = vmatprep.mubr.f32.mxu0 0.0
        %758 = vmatmul.mubr.f32.gmra.mrb[0].mxu0 %v363
        %v759 = vpop.f32.mrb[0].mxu0
        %v760 = vadd.f32 0.0, %v759
        %v761 = vpop.f32.mrb[0].mxu0
        %762 = vdwg.mxu0
        %s763 = sld [smem:[#allocation3 + %s32]]
        %s764 = sld [smem:[#allocation4 + %s32]]
        %v765 = vstv %s764
        %vm766 = vcmp.lt.s32.totalorder %v463, %v765
        %v767 = vstv %s763
        %vm768 = vcmp.lt.s32.totalorder %v461, %v767
        %v769 = vsel %vm768, 1, 0
        %v770 = vcvt.s32.f32 %v769
        %v771 = vsel %vm766, 1, 0
        %vm772 = vcmp.eq.s32.totalorder %v771, 1
        %v773 = vsel %vm772, %v760, -1e+30
        %774 = vmax.xlane.f32.xlu0 %v773
        %v775 = vpop.xlane.xlu0 %774
        %v776 = vsub.f32 %v773, %v775
        %v777 = vmul.f32 %v776, 1.442695
        %v778 = vpow.pop %v777
        %779 = vadd.xlane.f32.xlu0 %v778
        %v780 = vpop.xlane.xlu0 %779
        %v781 = vrcp.pop %v780
        %v782 = vmul.f32 %v778, %v781
        %v783 = vmul.f32 %v782, %v770
        %784 = vst [vmem:[%s267] sm:$0xff] %v783
        %s785 = sand.u32 %s176, 1
        %s786 = scalar_lea.sflag [#allocation6], %s785
        %s787 = sand.u32 %s176, 1
        %s788 = smul.addr %s787, 8
        %s789 = scalar_lea.vmem [#allocation5], %s788
        // Predicated region
        $region45: #{tpu_custom_call.1} parent=43 // pred_check
          %p790 = pneg %p186
        $region46: #{tpu_custom_call.1} parent=43 // pred_check_branch
          %792 = sbr.rel (%p790) target = $region48
        $region47: #{tpu_custom_call.1} parent=43 // pred_region
          %s794 = ssub.s32 128, 128
          %795 = vsyncadd %s786, %s794
          %s796 = smul.addr %s32, 128
          %s797 = scalar_lea.hbm %s8, %s796
          %s799 = sshll.u32 %s789, 4
          %s800 = int_to_ptr.vmem [resolvable:$true] %s799
          %802 = dma.vmem_to_hbm [thread:$0]  %s800, 128, %s797, %s786
        $region48: #{tpu_custom_call.1} parent=43 // pred_fallthru
          _
      $region44: #{tpu_custom_call.1} parent=5 // pred_fallthru
        _
      %p803 = scmp.le.s32.totalorder 2, %s27
      // Predicated region
      $region49: #{tpu_custom_call.1} parent=5 // pred_check
        %p804 = pneg %p803
      $region50: #{tpu_custom_call.1} parent=5 // pred_check_branch
        %806 = sbr.rel (%p804) target = $region52
      $region51: #{tpu_custom_call.1} parent=5 // pred_region
        %s807 = ssub.s32 %s27, 2
        // Predicated region
        $region53: #{tpu_custom_call.1} parent=51 // pred_check
          %p808 = pneg %p192
        $region54: #{tpu_custom_call.1} parent=51 // pred_check_branch
          %810 = sbr.rel (%p808) target = $region56
        $region55: #{tpu_custom_call.1} parent=51 // pred_region
          %s811 = sand.u32 %s177, 1
          %s812 = scalar_lea.sflag [#allocation6], %s811
          %s813 = sand.u32 %s177, 1
          %s814 = smul.addr %s813, 8
          %s815 = scalar_lea.vmem [#allocation5], %s814
          %816 = dma.done %s812, 128
        $region56: #{tpu_custom_call.1} parent=51 // pred_fallthru
          _
      $region52: #{tpu_custom_call.1} parent=5 // pred_fallthru
        _
    $region6: #{tpu_custom_call.1} parent=1 // loop_footer
      %s31 = sadd.s32 1, %s27
    $region7: #{tpu_custom_call.1} parent=1 // loop_footer_branch
      %26 = sbr.rel target = $region3
    $region8: #{tpu_custom_call.1} parent=1 // loop_exit
      _
    %817 = vsyncpa [#allocation6], 1
    %s818 = scalar_lea.sflag [#allocation6], 1
    %819 = vsyncpa %s818, 1

</llo_original>
